<compile_context>
chip_gen: v7x
topology: tpu7x:2x2x1
jax: 0.10.0
libtpu: 0.0.40
codegen_flags: <defaults>
</compile_context>

<pallas_src>
import jax
import jax.numpy as jnp
from jax.experimental import pallas as pl
from jax.experimental.pallas import tpu as pltpu

HIDDEN = 256           # layer1_no == layer2_no == 256
BN_EPS = 1e-5
LANE = 128             # TPU lane width (pad output head to a multiple of this)
DEFAULT_VMEM_LIMIT = 48 * 1024 * 1024   # explicit, safe on v5e/v6e/v7x


# ----------------------------------------------------------------------------
# BN helpers (all f32; stats stay f32 to avoid cancellation issues)
# ----------------------------------------------------------------------------
def _bn_scale_shift(s, q, gamma, beta, inv_n):
    """Fold training-mode BN into one per-feature scale/shift."""
    mean = s * inv_n
    var = q * inv_n - mean * mean                  # biased variance (/N)
    scale = gamma * jax.lax.rsqrt(var + BN_EPS)    # rsqrt -> EUP slot
    shift = beta - mean * scale
    return scale, shift


def _bn_relu_fused(h, gamma, beta, inv_n):
    """One-pass batch stats + folded BN + ReLU (fused small-batch kernel)."""
    s = jnp.sum(h, axis=0, keepdims=True)
    q = jnp.sum(h * h, axis=0, keepdims=True)
    scale, shift = _bn_scale_shift(s, q, gamma, beta, inv_n)
    return jnp.maximum(h * scale + shift, 0.0)


# ----------------------------------------------------------------------------
# Fused single-invocation kernel (small batch: everything in VMEM, no grid)
# ----------------------------------------------------------------------------
def _make_fused_kernel(inv_n):
    def kernel(x_ref, w1_ref, g1_ref, be1_ref, w2_ref, g2_ref, be2_ref,
               w3_ref, b3_ref, o_ref):
        w1 = w1_ref[...]
        h = jnp.dot(x_ref[...].astype(w1.dtype), w1,
                    preferred_element_type=jnp.float32)
        h = _bn_relu_fused(h, g1_ref[...], be1_ref[...], inv_n)

        w2 = w2_ref[...]
        h = jnp.dot(h.astype(w2.dtype), w2, preferred_element_type=jnp.float32)
        h = _bn_relu_fused(h, g2_ref[...], be2_ref[...], inv_n)

        w3 = w3_ref[...]
        o = jnp.dot(h.astype(w3.dtype), w3,
                    preferred_element_type=jnp.float32) + b3_ref[...]
        o_ref[...] = o.astype(o_ref.dtype)
    return kernel


# ----------------------------------------------------------------------------
# Batch-tiled pipeline (full-batch BN stats -> three chained pallas_calls)
# ----------------------------------------------------------------------------
def _stage1_kernel(x_ref, w1_ref, h1_ref, s_ref, q_ref):
    """h1 = x @ W1 per batch tile; accumulate full-batch sum/sumsq of h1."""
    @pl.when(pl.program_id(0) == 0)
    def _():
        s_ref[...] = jnp.zeros_like(s_ref)
        q_ref[...] = jnp.zeros_like(q_ref)

    w1 = w1_ref[...]
    h = jnp.dot(x_ref[...].astype(w1.dtype), w1,
                preferred_element_type=jnp.float32)
    h1_ref[...] = h
    s_ref[...] += jnp.sum(h, axis=0, keepdims=True)
    q_ref[...] += jnp.sum(h * h, axis=0, keepdims=True)


def _make_stage2_kernel(inv_n):
    def kernel(s1_ref, q1_ref, h1_ref, g1_ref, be1_ref, w2_ref,
               h2_ref, s2_ref, q2_ref):
        """BN1(h1)+ReLU -> h2 = a @ W2; accumulate full-batch stats of h2."""
        @pl.when(pl.program_id(0) == 0)
        def _():
            s2_ref[...] = jnp.zeros_like(s2_ref)
            q2_ref[...] = jnp.zeros_like(q2_ref)

        scale, shift = _bn_scale_shift(s1_ref[...], q1_ref[...],
                                       g1_ref[...], be1_ref[...], inv_n)
        a = jnp.maximum(h1_ref[...] * scale + shift, 0.0)

        w2 = w2_ref[...]
        h = jnp.dot(a.astype(w2.dtype), w2, preferred_element_type=jnp.float32)
        h2_ref[...] = h
        s2_ref[...] += jnp.sum(h, axis=0, keepdims=True)
        q2_ref[...] += jnp.sum(h * h, axis=0, keepdims=True)
    return kernel


def _make_stage3_kernel(inv_n):
    def kernel(s2_ref, q2_ref, h2_ref, g2_ref, be2_ref, w3_ref, b3_ref, o_ref):
        """BN2(h2)+ReLU -> out = a @ W3_padded + b3_padded (lane-dense store)."""
        scale, shift = _bn_scale_shift(s2_ref[...], q2_ref[...],
                                       g2_ref[...], be2_ref[...], inv_n)
        a = jnp.maximum(h2_ref[...] * scale + shift, 0.0)
        w3 = w3_ref[...]
        o = jnp.dot(a.astype(w3.dtype), w3,
                    preferred_element_type=jnp.float32) + b3_ref[...]
        o_ref[...] = o.astype(o_ref.dtype)
    return kernel


def _tiled_forward(x, w1, g1, be1, w2, g2, be2, w3p, b3p, *,
                   batch_tile, padded, inv_n, vmem_limit_bytes):
    B, in_dim = x.shape
    nb = B // batch_tile
    cp_arb = pltpu.CompilerParams(dimension_semantics=("arbitrary",),
                                  vmem_limit_bytes=vmem_limit_bytes)
    cp_par = pltpu.CompilerParams(dimension_semantics=("parallel",),
                                  vmem_limit_bytes=vmem_limit_bytes)
    stat_shape = jax.ShapeDtypeStruct((1, HIDDEN), jnp.float32)
    stat_spec = pl.BlockSpec((1, HIDDEN), lambda i: (0, 0))
    tile_spec = pl.BlockSpec((batch_tile, HIDDEN), lambda i: (i, 0))

    # ---- stage 1: x @ W1 (per tile) + full-batch stats ----
    h1, s1, q1 = pl.pallas_call(
        _stage1_kernel,
        out_shape=(jax.ShapeDtypeStruct((B, HIDDEN), jnp.float32),
                   stat_shape, stat_shape),
        grid=(nb,),
        in_specs=[pl.BlockSpec((batch_tile, in_dim), lambda i: (i, 0)),
                  pl.BlockSpec((in_dim, HIDDEN), lambda i: (0, 0))],
        out_specs=(tile_spec, stat_spec, stat_spec),
        compiler_params=cp_arb,
    )(x, w1)

    # ---- stage 2: BN1+ReLU, @ W2 (per tile) + full-batch stats ----
    h2, s2, q2 = pl.pallas_call(
        _make_stage2_kernel(inv_n),
        out_shape=(jax.ShapeDtypeStruct((B, HIDDEN), jnp.float32),
                   stat_shape, stat_shape),
        grid=(nb,),
        in_specs=[stat_spec, stat_spec, tile_spec, stat_spec, stat_spec,
                  pl.BlockSpec((HIDDEN, HIDDEN), lambda i: (0, 0))],
        out_specs=(tile_spec, stat_spec, stat_spec),
        compiler_params=cp_arb,
    )(s1, q1, h1, g1, be1, w2)

    # ---- stage 3: BN2+ReLU, @ W3_padded (pure map -> "parallel"/megacore) ----
    out_p = pl.pallas_call(
        _make_stage3_kernel(inv_n),
        out_shape=jax.ShapeDtypeStruct((B, padded), jnp.float32),
        grid=(nb,),
        in_specs=[stat_spec, stat_spec, tile_spec, stat_spec, stat_spec,
                  pl.BlockSpec((HIDDEN, padded), lambda i: (0, 0)),
                  pl.BlockSpec((1, padded), lambda i: (0, 0))],
        out_specs=pl.BlockSpec((batch_tile, padded), lambda i: (i, 0)),
        compiler_params=cp_par,
    )(s2, q2, h2, g2, be2, w3p, b3p)
    return out_p


# ----------------------------------------------------------------------------
# Public wrapper
# ----------------------------------------------------------------------------
def large_network_forward(x, params, *, matmul_dtype=jnp.bfloat16,
                          batch_tile=256,
                          vmem_limit_bytes=DEFAULT_VMEM_LIMIT):
    """x: (B, in_dim) f32.  params: dict of weights (see init_params)."""
    B, in_dim = x.shape
    out_dim = params["w3"].shape[1]
    padded = ((out_dim + LANE - 1) // LANE) * LANE   # lane-dense output head
    inv_n = 1.0 / float(B)

    # Wrapper-side (one-off) weight casts and output-head padding.
    # Note: b1/b2 are intentionally NOT passed -- training-mode BN cancels them.
    w1 = params["w1"].astype(matmul_dtype)
    w2 = params["w2"].astype(matmul_dtype)
    w3p = (jnp.zeros((HIDDEN, padded), jnp.float32)
           .at[:, :out_dim].set(params["w3"]).astype(matmul_dtype))
    b3p = jnp.zeros((1, padded), jnp.float32).at[:, :out_dim].set(params["b3"])
    g1, be1 = params["g1"], params["be1"]
    g2, be2 = params["g2"], params["be2"]

    if B <= batch_tile or (B % batch_tile) != 0:
        # Small (or ragged) batch: single fused no-grid call, all in VMEM.
        # TODO(synk): very large ragged batches should be padded with masked
        #             BN statistics instead of falling back to the fused path.
        out_p = pl.pallas_call(
            _make_fused_kernel(inv_n),
            out_shape=jax.ShapeDtypeStruct((B, padded), jnp.float32),
            compiler_params=pltpu.CompilerParams(
                vmem_limit_bytes=vmem_limit_bytes),
        )(x, w1, g1, be1, w2, g2, be2, w3p, b3p)
    else:
        out_p = _tiled_forward(x, w1, g1, be1, w2, g2, be2, w3p, b3p,
                               batch_tile=batch_tile, padded=padded,
                               inv_n=inv_n,
                               vmem_limit_bytes=vmem_limit_bytes)
    return out_p[:, :out_dim]


# ----------------------------------------------------------------------------
# Params / reference
# ----------------------------------------------------------------------------
def init_params(key, in_dim, out_dim):
    """Deterministic synthetic init (shapes match the PyTorch module)."""
    k1, k2, k3, k4, k5, k6 = jax.random.split(key, 6)
    s1 = 1.0 / jnp.sqrt(in_dim)
    s2 = 1.0 / jnp.sqrt(HIDDEN)
    return {
        # Linear layers stored as (in, out) = transpose of PyTorch (out, in).
        "w1": jax.random.uniform(k1, (in_dim, HIDDEN), jnp.float32, -s1, s1),
        "b1": jax.random.uniform(k2, (1, HIDDEN), jnp.float32, -s1, s1),
        "w2": jax.random.uniform(k3, (HIDDEN, HIDDEN), jnp.float32, -s2, s2),
        "b2": jax.random.uniform(k4, (1, HIDDEN), jnp.float32, -s2, s2),
        "w3": jax.random.uniform(k5, (HIDDEN, out_dim), jnp.float32, -s2, s2),
        "b3": jax.random.uniform(k6, (1, out_dim), jnp.float32, -s2, s2),
        # BatchNorm affine params (PyTorch default init: gamma=1, beta=0).
        "g1": jnp.ones((1, HIDDEN), jnp.float32),
        "be1": jnp.zeros((1, HIDDEN), jnp.float32),
        "g2": jnp.ones((1, HIDDEN), jnp.float32),
        "be2": jnp.zeros((1, HIDDEN), jnp.float32),
    }


def reference_forward(x, p):
    """Plain-JAX f32 reference with full PyTorch semantics (incl. b1/b2)."""
    def bn_relu(h, g, b):
        m = jnp.mean(h, axis=0, keepdims=True)
        v = jnp.mean((h - m) ** 2, axis=0, keepdims=True)
        return jnp.maximum((h - m) * jax.lax.rsqrt(v + BN_EPS) * g + b, 0.0)

    h = bn_relu(jnp.dot(x, p["w1"]) + p["b1"], p["g1"], p["be1"])
    h = bn_relu(jnp.dot(h, p["w2"]) + p["b2"], p["g2"], p["be2"])
    return jnp.dot(h, p["w3"]) + p["b3"]


# ----------------------------------------------------------------------------
# Showcase / correctness check (kept small and fast)
# ----------------------------------------------------------------------------
if __name__ == "__main__":
    key = jax.random.PRNGKey(0)
    kx, kp, kx2 = jax.random.split(key, 3)

    in_dim, out_dim = 8, 4
    params = init_params(kp, in_dim, out_dim)

    # --- small batch: fused no-grid path, f32 matmuls (tight check) ---
    x_small = jax.random.normal(kx, (8, in_dim), dtype=jnp.float32)
    out = jax.block_until_ready(
        large_network_forward(x_small, params, matmul_dtype=jnp.float32))
    ref = reference_forward(x_small, params)
    assert out.shape == (8, out_dim)
    assert jnp.allclose(out, ref, atol=1e-4, rtol=1e-4), "fused path mismatch"

    # --- larger batch: tiled 3-stage pipeline (full-batch BN over 2 tiles) ---
    x_big = jax.random.normal(kx2, (256, in_dim), dtype=jnp.float32)
    out_big = jax.block_until_ready(
        large_network_forward(x_big, params, matmul_dtype=jnp.float32,
                              batch_tile=128))
    ref_big = reference_forward(x_big, params)
    assert out_big.shape == (256, out_dim)
    assert jnp.allclose(out_big, ref_big, atol=1e-3, rtol=1e-3), \
        "tiled path mismatch"

    print("KERNEL_OK")
</pallas_src>

<mosaic_0001>
module attributes {stable_mosaic.version = 11 : i64} {
  func.func @kernel(%arg0: memref<8x8xf32, #tpu.memory_space<vmem>>, %arg1: memref<8x256xf32, #tpu.memory_space<vmem>>, %arg2: memref<1x256xf32, #tpu.memory_space<vmem>>, %arg3: memref<1x256xf32, #tpu.memory_space<vmem>>, %arg4: memref<256x256xf32, #tpu.memory_space<vmem>>, %arg5: memref<1x256xf32, #tpu.memory_space<vmem>>, %arg6: memref<1x256xf32, #tpu.memory_space<vmem>>, %arg7: memref<256x128xf32, #tpu.memory_space<vmem>>, %arg8: memref<1x128xf32, #tpu.memory_space<vmem>>, %arg9: memref<8x128xf32, #tpu.memory_space<vmem>>) attributes {dimension_semantics = [], scalar_prefetch = 0 : i64, scratch_operands = 0 : i64, tpu.core_type = #tpu.core_type<tc>} {
    %c0 = arith.constant 0 : index
    %c0_0 = arith.constant 0 : index
    %0 = vector.load %arg1[%c0, %c0_0] : memref<8x256xf32, #tpu.memory_space<vmem>>, vector<8x256xf32>
    %c0_1 = arith.constant 0 : index
    %c0_2 = arith.constant 0 : index
    %1 = vector.load %arg0[%c0_1, %c0_2] : memref<8x8xf32, #tpu.memory_space<vmem>>, vector<8x8xf32>
    %cst = arith.constant dense<0.000000e+00> : vector<8x256xf32>
    %2 = tpu.matmul %1, %0, %cst {dimension_numbers = #tpu.dot_dimension_numbers<[1], [0], [0], [1], [0, 0, 1, 1], [], []>} : vector<8x8xf32>, vector<8x256xf32>, vector<8x256xf32> -> vector<8x256xf32>
    %c0_3 = arith.constant 0 : index
    %c0_4 = arith.constant 0 : index
    %3 = vector.load %arg2[%c0_3, %c0_4] : memref<1x256xf32, #tpu.memory_space<vmem>>, vector<1x256xf32>
    %c0_5 = arith.constant 0 : index
    %c0_6 = arith.constant 0 : index
    %4 = vector.load %arg3[%c0_5, %c0_6] : memref<1x256xf32, #tpu.memory_space<vmem>>, vector<1x256xf32>
    %cst_7 = arith.constant dense<0.000000e+00> : vector<256xf32>
    %5 = vector.multi_reduction <add>, %2, %cst_7 [0] : vector<8x256xf32> to vector<256xf32>
    %6 = vector.shape_cast %5 : vector<256xf32> to vector<1x256xf32>
    %7 = arith.mulf %2, %2 : vector<8x256xf32>
    %cst_8 = arith.constant dense<0.000000e+00> : vector<256xf32>
    %8 = vector.multi_reduction <add>, %7, %cst_8 [0] : vector<8x256xf32> to vector<256xf32>
    %9 = vector.shape_cast %8 : vector<256xf32> to vector<1x256xf32>
    %cst_9 = arith.constant 1.250000e-01 : f32
    %10 = vector.broadcast %cst_9 : f32 to vector<1x256xf32>
    %11 = arith.mulf %6, %10 : vector<1x256xf32>
    %cst_10 = arith.constant 1.250000e-01 : f32
    %12 = vector.broadcast %cst_10 : f32 to vector<1x256xf32>
    %13 = arith.mulf %9, %12 : vector<1x256xf32>
    %14 = arith.mulf %11, %11 : vector<1x256xf32>
    %15 = arith.subf %13, %14 : vector<1x256xf32>
    %cst_11 = arith.constant 9.99999974E-6 : f32
    %16 = vector.broadcast %cst_11 : f32 to vector<1x256xf32>
    %17 = arith.addf %15, %16 : vector<1x256xf32>
    %18 = math.rsqrt %17 : vector<1x256xf32>
    %19 = arith.mulf %3, %18 : vector<1x256xf32>
    %20 = arith.mulf %11, %19 : vector<1x256xf32>
    %21 = arith.subf %4, %20 : vector<1x256xf32>
    %22 = vector.broadcast %19 : vector<1x256xf32> to vector<8x256xf32>
    %23 = arith.mulf %2, %22 : vector<8x256xf32>
    %24 = vector.broadcast %21 : vector<1x256xf32> to vector<8x256xf32>
    %25 = arith.addf %23, %24 : vector<8x256xf32>
    %cst_12 = arith.constant 0.000000e+00 : f32
    %26 = vector.broadcast %cst_12 : f32 to vector<8x256xf32>
    %27 = arith.maximumf %25, %26 : vector<8x256xf32>
    %c0_13 = arith.constant 0 : index
    %c0_14 = arith.constant 0 : index
    %28 = vector.load %arg4[%c0_13, %c0_14] : memref<256x256xf32, #tpu.memory_space<vmem>>, vector<256x256xf32>
    %cst_15 = arith.constant dense<0.000000e+00> : vector<8x256xf32>
    %29 = tpu.matmul %27, %28, %cst_15 {dimension_numbers = #tpu.dot_dimension_numbers<[1], [0], [0], [1], [0, 0, 1, 1], [], []>} : vector<8x256xf32>, vector<256x256xf32>, vector<8x256xf32> -> vector<8x256xf32>
    %c0_16 = arith.constant 0 : index
    %c0_17 = arith.constant 0 : index
    %30 = vector.load %arg5[%c0_16, %c0_17] : memref<1x256xf32, #tpu.memory_space<vmem>>, vector<1x256xf32>
    %c0_18 = arith.constant 0 : index
    %c0_19 = arith.constant 0 : index
    %31 = vector.load %arg6[%c0_18, %c0_19] : memref<1x256xf32, #tpu.memory_space<vmem>>, vector<1x256xf32>
    %cst_20 = arith.constant dense<0.000000e+00> : vector<256xf32>
    %32 = vector.multi_reduction <add>, %29, %cst_20 [0] : vector<8x256xf32> to vector<256xf32>
    %33 = vector.shape_cast %32 : vector<256xf32> to vector<1x256xf32>
    %34 = arith.mulf %29, %29 : vector<8x256xf32>
    %cst_21 = arith.constant dense<0.000000e+00> : vector<256xf32>
    %35 = vector.multi_reduction <add>, %34, %cst_21 [0] : vector<8x256xf32> to vector<256xf32>
    %36 = vector.shape_cast %35 : vector<256xf32> to vector<1x256xf32>
    %cst_22 = arith.constant 1.250000e-01 : f32
    %37 = vector.broadcast %cst_22 : f32 to vector<1x256xf32>
    %38 = arith.mulf %33, %37 : vector<1x256xf32>
    %cst_23 = arith.constant 1.250000e-01 : f32
    %39 = vector.broadcast %cst_23 : f32 to vector<1x256xf32>
    %40 = arith.mulf %36, %39 : vector<1x256xf32>
    %41 = arith.mulf %38, %38 : vector<1x256xf32>
    %42 = arith.subf %40, %41 : vector<1x256xf32>
    %cst_24 = arith.constant 9.99999974E-6 : f32
    %43 = vector.broadcast %cst_24 : f32 to vector<1x256xf32>
    %44 = arith.addf %42, %43 : vector<1x256xf32>
    %45 = math.rsqrt %44 : vector<1x256xf32>
    %46 = arith.mulf %30, %45 : vector<1x256xf32>
    %47 = arith.mulf %38, %46 : vector<1x256xf32>
    %48 = arith.subf %31, %47 : vector<1x256xf32>
    %49 = vector.broadcast %46 : vector<1x256xf32> to vector<8x256xf32>
    %50 = arith.mulf %29, %49 : vector<8x256xf32>
    %51 = vector.broadcast %48 : vector<1x256xf32> to vector<8x256xf32>
    %52 = arith.addf %50, %51 : vector<8x256xf32>
    %cst_25 = arith.constant 0.000000e+00 : f32
    %53 = vector.broadcast %cst_25 : f32 to vector<8x256xf32>
    %54 = arith.maximumf %52, %53 : vector<8x256xf32>
    %c0_26 = arith.constant 0 : index
    %c0_27 = arith.constant 0 : index
    %55 = vector.load %arg7[%c0_26, %c0_27] : memref<256x128xf32, #tpu.memory_space<vmem>>, vector<256x128xf32>
    %cst_28 = arith.constant dense<0.000000e+00> : vector<8x128xf32>
    %56 = tpu.matmul %54, %55, %cst_28 {dimension_numbers = #tpu.dot_dimension_numbers<[1], [0], [0], [1], [0, 0, 1, 1], [], []>} : vector<8x256xf32>, vector<256x128xf32>, vector<8x128xf32> -> vector<8x128xf32>
    %c0_29 = arith.constant 0 : index
    %c0_30 = arith.constant 0 : index
    %57 = vector.load %arg8[%c0_29, %c0_30] : memref<1x128xf32, #tpu.memory_space<vmem>>, vector<1x128xf32>
    %58 = vector.broadcast %57 : vector<1x128xf32> to vector<8x128xf32>
    %59 = arith.addf %56, %58 : vector<8x128xf32>
    %c0_31 = arith.constant 0 : index
    %c0_32 = arith.constant 0 : index
    %60 = vector.load %arg9[%c0_31, %c0_32] : memref<8x128xf32, #tpu.memory_space<vmem>>, vector<8x128xf32>
    tpu.vector_store %arg9[%c0_31, %c0_32], %59 {strides = array<i32>} : memref<8x128xf32, #tpu.memory_space<vmem>>, vector<8x128xf32>,
    return
  }
}

</mosaic_0001>

<llo_original>
// kernel: tpu_custom_call.1
$region0: #{tpu_custom_call.1}
  #allocation0 [shape = 'u32[]', space=smem, size = 0x4, offset = 0x4, fixed_abs, tag = 'smem constant byte address 0x4 - core index']
  #allocation1 [shape = 'u32[144,128]{1,0:T(1,128)}', space=vmem, size = 0x12000, scoped, tag = 'internal scratch']
  %s0 = inlined_call_operand.hbm [shape: f32[8,8], index: 0, kind: input, shape index: {}]
  %s1 = inlined_call_operand.hbm [shape: f32[8,256], index: 1, kind: input, shape index: {}]
  %s2 = inlined_call_operand.vmem [shape: f32[1,256], index: 2, kind: input, shape index: {}]
  %s3 = inlined_call_operand.vmem [shape: f32[1,256], index: 3, kind: input, shape index: {}]
  %s4 = inlined_call_operand.hbm [shape: f32[256,256], index: 4, kind: input, shape index: {}]
  %s5 = inlined_call_operand.vmem [shape: f32[1,256], index: 5, kind: input, shape index: {}]
  %s6 = inlined_call_operand.vmem [shape: f32[1,256], index: 6, kind: input, shape index: {}]
  %s7 = inlined_call_operand.hbm [shape: f32[256,128], index: 7, kind: input, shape index: {}]
  %s8 = inlined_call_operand.vmem [shape: f32[1,128], index: 8, kind: input, shape index: {}]
  %s9 = inlined_call_operand.hbm [shape: f32[8,128], index: 9, kind: output, shape index: {}]
  %s10 = sld [smem:[#allocation0]]
  $region62: #{tpu_custom_call.1} parent=0
    _
  %s12 = ssub.s32 1, %s10
  %s13 = scalar_select 0, %s12, %s10
  $region1: #{tpu_custom_call.1} parent=0
    #allocation2 [shape = 'u8[4096]{0}', space=vmem, size = 0x1000, scoped, tag = 'input window, operand 0, single buffered']
    #allocation3 [shape = 's32[1]{0}', space=sflag, size = 0x4, scoped, tag = 'scoped memory for tpu_custom_call.1']
    #allocation4 [shape = 's32[1]{0}', space=sflag, size = 0x4, scoped, tag = 'scoped memory for tpu_custom_call.1']
    #allocation5 [shape = 'u8[8192]{0}', space=vmem, size = 0x2000, scoped, tag = 'input window, operand 1, single buffered']
    #allocation6 [shape = 's32[1]{0}', space=sflag, size = 0x4, scoped, tag = 'scoped memory for tpu_custom_call.1']
    #allocation7 [shape = 'u8[262144]{0}', space=vmem, size = 0x40000, scoped, tag = 'input window, operand 4, single buffered']
    #allocation8 [shape = 'u8[131072]{0}', space=vmem, size = 0x20000, scoped, tag = 'input window, operand 7, single buffered']
    #allocation9 [shape = 's32[1]{0}', space=sflag, size = 0x4, scoped, tag = 'scoped memory for tpu_custom_call.1']
    #allocation10 [shape = 'u8[4096]{0}', space=vmem, size = 0x1000, scoped, tag = 'output window, operand 0, single buffered']
    %14 = vsyncpa [#allocation3], 0
    %15 = vsyncpa [#allocation6], 0
    %16 = vsyncpa [#allocation9], 0
    %17 = vsyncpa [#allocation4], 0
    // Predicated region
    $region2: #{tpu_custom_call.1} parent=1 // pred_check
      _
    $region3: #{tpu_custom_call.1} parent=1 // pred_check_branch
      %19 = sbr.rel (0) target = $region5
    $region4: #{tpu_custom_call.1} parent=1 // pred_region
      %s21 = ssub.s32 128, 128
      %22 = vsyncadd [#allocation3], %s21
      %s24 = sshll.u32 [#allocation2], 4
      %s25 = int_to_ptr.vmem [resolvable:$true] %s24
      %27 = dma.hbm_to_vmem [thread:$0]  %s0, 128, %s25, [#allocation3]
    $region5: #{tpu_custom_call.1} parent=1 // pred_fallthru
      _
    // Predicated region
    $region6: #{tpu_custom_call.1} parent=1 // pred_check
      _
    $region7: #{tpu_custom_call.1} parent=1 // pred_check_branch
      %29 = sbr.rel (0) target = $region9
    $region8: #{tpu_custom_call.1} parent=1 // pred_region
      %s31 = ssub.s32 256, 256
      %32 = vsyncadd [#allocation6], %s31
      %s34 = sshll.u32 [#allocation5], 4
      %s35 = int_to_ptr.vmem [resolvable:$true] %s34
      %37 = dma.hbm_to_vmem [thread:$0]  %s1, 256, %s35, [#allocation6]
    $region9: #{tpu_custom_call.1} parent=1 // pred_fallthru
      _
    // Predicated region
    $region10: #{tpu_custom_call.1} parent=1 // pred_check
      _
    $region11: #{tpu_custom_call.1} parent=1 // pred_check_branch
      %39 = sbr.rel (0) target = $region13
    $region12: #{tpu_custom_call.1} parent=1 // pred_region
      _
    $region13: #{tpu_custom_call.1} parent=1 // pred_fallthru
      _
    // Predicated region
    $region14: #{tpu_custom_call.1} parent=1 // pred_check
      _
    $region15: #{tpu_custom_call.1} parent=1 // pred_check_branch
      %41 = sbr.rel (0) target = $region17
    $region16: #{tpu_custom_call.1} parent=1 // pred_region
      _
    $region17: #{tpu_custom_call.1} parent=1 // pred_fallthru
      _
    // Predicated region
    $region18: #{tpu_custom_call.1} parent=1 // pred_check
      _
    $region19: #{tpu_custom_call.1} parent=1 // pred_check_branch
      %43 = sbr.rel (0) target = $region21
    $region20: #{tpu_custom_call.1} parent=1 // pred_region
      %s45 = ssub.s32 8192, 8192
      %46 = vsyncadd [#allocation6], %s45
      %s47 = sshll.u32 [#allocation7], 4
      %s48 = int_to_ptr.vmem [resolvable:$true] %s47
      %53 = dma.hbm_to_vmem [thread:$0]  %s4, 8192, %s48, [#allocation6], 256, 256, 16
    $region21: #{tpu_custom_call.1} parent=1 // pred_fallthru
      _
    // Predicated region
    $region22: #{tpu_custom_call.1} parent=1 // pred_check
      _
    $region23: #{tpu_custom_call.1} parent=1 // pred_check_branch
      %55 = sbr.rel (0) target = $region25
    $region24: #{tpu_custom_call.1} parent=1 // pred_region
      _
    $region25: #{tpu_custom_call.1} parent=1 // pred_fallthru
      _
    // Predicated region
    $region26: #{tpu_custom_call.1} parent=1 // pred_check
      _
    $region27: #{tpu_custom_call.1} parent=1 // pred_check_branch
      %57 = sbr.rel (0) target = $region29
    $region28: #{tpu_custom_call.1} parent=1 // pred_region
      _
    $region29: #{tpu_custom_call.1} parent=1 // pred_fallthru
      _
    // Predicated region
    $region30: #{tpu_custom_call.1} parent=1 // pred_check
      _
    $region31: #{tpu_custom_call.1} parent=1 // pred_check_branch
      %59 = sbr.rel (0) target = $region33
    $region32: #{tpu_custom_call.1} parent=1 // pred_region
      %s61 = ssub.s32 4096, 4096
      %62 = vsyncadd [#allocation9], %s61
      %s63 = sshll.u32 [#allocation8], 4
      %s64 = int_to_ptr.vmem [resolvable:$true] %s63
      %69 = dma.hbm_to_vmem [thread:$0]  %s7, 4096, %s64, [#allocation9], 128, 128, 8
    $region33: #{tpu_custom_call.1} parent=1 // pred_fallthru
      _
    // Predicated region
    $region34: #{tpu_custom_call.1} parent=1 // pred_check
      _
    $region35: #{tpu_custom_call.1} parent=1 // pred_check_branch
      %71 = sbr.rel (0) target = $region37
    $region36: #{tpu_custom_call.1} parent=1 // pred_region
      _
    $region37: #{tpu_custom_call.1} parent=1 // pred_fallthru
      _
    // Predicated region
    $region38: #{tpu_custom_call.1} parent=1 // pred_check
      _
    $region39: #{tpu_custom_call.1} parent=1 // pred_check_branch
      %73 = sbr.rel (0) target = $region41
    $region40: #{tpu_custom_call.1} parent=1 // pred_region
      %74 = dma.done [#allocation3], 128
    $region41: #{tpu_custom_call.1} parent=1 // pred_fallthru
      _
    // Predicated region
    $region42: #{tpu_custom_call.1} parent=1 // pred_check
      _
    $region43: #{tpu_custom_call.1} parent=1 // pred_check_branch
      %76 = sbr.rel (0) target = $region45
    $region44: #{tpu_custom_call.1} parent=1 // pred_region
      %77 = dma.done [#allocation6], 256
    $region45: #{tpu_custom_call.1} parent=1 // pred_fallthru
      _
    // Predicated region
    $region46: #{tpu_custom_call.1} parent=1 // pred_check
      _
    $region47: #{tpu_custom_call.1} parent=1 // pred_check_branch
      %79 = sbr.rel (0) target = $region49
    $region48: #{tpu_custom_call.1} parent=1 // pred_region
      %80 = dma.done [#allocation6], 8192
    $region49: #{tpu_custom_call.1} parent=1 // pred_fallthru
      _
    // Predicated region
    $region50: #{tpu_custom_call.1} parent=1 // pred_check
      _
    $region51: #{tpu_custom_call.1} parent=1 // pred_check_branch
      %82 = sbr.rel (0) target = $region53
    $region52: #{tpu_custom_call.1} parent=1 // pred_region
      %83 = dma.done [#allocation9], 4096
    $region53: #{tpu_custom_call.1} parent=1 // pred_fallthru
      _
    %v84 = vld [vmem:[#allocation5] sm:$0xff]
    %v85 = vld [vmem:[#allocation5 + $0x8] sm:$0xff]
    %v86 = vld [vmem:[#allocation2] sm:$0xff]
    %vm87 = vcmask 64512
    %v89 = vsel %vm87, %v86, 0
    %91 = vmatprep.subr.mxu0 %v85
    %92 = vmatpush1.msra.mxu0 %v84
    %93 = vmatprep.subr.mxu0 0.0
    %94 = vmatpush1.msra.mxu0 0.0
    %95 = vmatprep.subr.mxu0 0.0
    %96 = vmatpush1.msra.mxu0 0.0
    %97 = vmatprep.subr.mxu0 0.0
    %98 = vmatpush1.msra.mxu0 0.0
    %99 = vmatprep.subr.mxu0 0.0
    %100 = vmatpush1.msra.mxu0 0.0
    %101 = vmatprep.subr.mxu0 0.0
    %102 = vmatpush1.msra.mxu0 0.0
    %103 = vmatprep.subr.mxu0 0.0
    %104 = vmatpush1.msra.mxu0 0.0
    %105 = vmatprep.subr.mxu0 0.0
    %106 = vmatpush1.msra.mxu0 0.0
    %107 = vmatprep.subr.mxu0 0.0
    %108 = vmatpush1.msra.mxu0 0.0
    %109 = vmatprep.subr.mxu0 0.0
    %110 = vmatpush1.msra.mxu0 0.0
    %111 = vmatprep.subr.mxu0 0.0
    %112 = vmatpush1.msra.mxu0 0.0
    %113 = vmatprep.subr.mxu0 0.0
    %114 = vmatpush1.msra.mxu0 0.0
    %115 = vmatprep.subr.mxu0 0.0
    %116 = vmatpush1.msra.mxu0 0.0
    %117 = vmatprep.subr.mxu0 0.0
    %118 = vmatpush1.msra.mxu0 0.0
    %119 = vmatprep.subr.mxu0 0.0
    %120 = vmatpush1.msra.mxu0 0.0
    %121 = vmatprep.subr.mxu0 0.0
    %122 = vmatpush1.msra.mxu0 0.0
    %123 = vmatprep.subr.mxu0 0.0
    %124 = vmatpush1.msra.mxu0 0.0
    %125 = vmatprep.subr.mxu0 0.0
    %126 = vmatpush1.msra.mxu0 0.0
    %127 = vmatprep.subr.mxu0 0.0
    %128 = vmatpush1.msra.mxu0 0.0
    %129 = vmatprep.subr.mxu0 0.0
    %130 = vmatpush1.msra.mxu0 0.0
    %131 = vmatprep.subr.mxu0 0.0
    %132 = vmatpush1.msra.mxu0 0.0
    %133 = vmatprep.subr.mxu0 0.0
    %134 = vmatpush1.msra.mxu0 0.0
    %135 = vmatprep.subr.mxu0 0.0
    %136 = vmatpush1.msra.mxu0 0.0
    %137 = vmatprep.subr.mxu0 0.0
    %138 = vmatpush1.msra.mxu0 0.0
    %139 = vmatprep.subr.mxu0 0.0
    %140 = vmatpush1.msra.mxu0 0.0
    %141 = vmatprep.subr.mxu0 0.0
    %142 = vmatpush1.msra.mxu0 0.0
    %143 = vmatprep.subr.mxu0 0.0
    %144 = vmatpush1.msra.mxu0 0.0
    %145 = vmatprep.subr.mxu0 0.0
    %146 = vmatpush1.msra.mxu0 0.0
    %147 = vmatprep.subr.mxu0 0.0
    %148 = vmatpush1.msra.mxu0 0.0
    %149 = vmatprep.subr.mxu0 0.0
    %150 = vmatpush1.msra.mxu0 0.0
    %151 = vmatprep.subr.mxu0 0.0
    %152 = vmatpush1.msra.mxu0 0.0
    %153 = vmatprep.subr.mxu0 0.0
    %154 = vmatpush1.msra.mxu0 0.0
    %155 = vmatprep.mubr.f32.mxu0 0.0
    %156 = vmatmul.mubr.f32.gmra.mrb[0].mxu0 %v89
    %v157 = vpop.f32.mrb[0].mxu0
    %v158 = vadd.f32 0.0, %v157
    %v159 = vpop.f32.mrb[0].mxu0
    %v160 = vadd.f32 0.0, %v159
    %161 = vdwg.mxu0
    %v162 = vld [vmem:[%s2] sm:$0x3]
    %v163 = vld [vmem:[%s3] sm:$0x3]
    %v164 = vrot.slane %v158, 4
    %v165 = vadd.f32 %v158, %v164
    %v166 = vrot.slane %v165, 2
    %v167 = vadd.f32 %v165, %v166
    %v168 = vrot.slane %v167, 1
    %v169 = vadd.f32 %v167, %v168
    %v170 = vrot.slane %v160, 4
    %v171 = vadd.f32 %v160, %v170
    %v172 = vrot.slane %v171, 2
    %v173 = vadd.f32 %v171, %v172
    %v174 = vrot.slane %v173, 1
    %v175 = vadd.f32 %v173, %v174
    %v176 = vmul.f32 %v158, %v158
    %v177 = vmul.f32 %v160, %v160
    %v178 = vrot.slane %v176, 4
    %v179 = vadd.f32 %v176, %v178
    %v180 = vrot.slane %v179, 2
    %v181 = vadd.f32 %v179, %v180
    %v182 = vrot.slane %v181, 1
    %v183 = vadd.f32 %v181, %v182
    %v184 = vrot.slane %v177, 4
    %v185 = vadd.f32 %v177, %v184
    %v186 = vrot.slane %v185, 2
    %v187 = vadd.f32 %v185, %v186
    %v188 = vrot.slane %v187, 1
    %v189 = vadd.f32 %v187, %v188
    %v190 = vmul.f32 %v169, 0.125
    %v191 = vmul.f32 %v175, 0.125
    %v192 = vmul.f32 %v183, 0.125
    %v193 = vmul.f32 %v189, 0.125
    %v194 = vmul.f32 %v190, %v190
    %v195 = vmul.f32 %v191, %v191
    %v196 = vsub.f32 %v192, %v194
    %v197 = vsub.f32 %v193, %v195
    %v198 = vadd.f32 %v196, 1e-05
    %v199 = vadd.f32 %v197, 1e-05
    %v200 = vrsqrt.pop %v198
    %v201 = vrsqrt.pop %v199
    %v204 = vcombine.low %v200, %v201
    %v206 = vunpack.c.l.s4 1966171168
    %v207 = vunpack.c.0.s8 %v206
    %v208 = vlaneseq
    %v209 = vshrl.u32 %v208, 7
    %v210 = vsub.s32 %v207, %v209
    %v211 = vrot.slane %v204, %v210
    %v213 = vunpack.c.l.s4 1966171168
    %v214 = vunpack.c.0.s8 %v213
    %v215 = vlaneseq
    %v216 = vshrl.u32 %v215, 7
    %v217 = vsub.s32 %v214, %v216
    %v218 = vrot.slane %v211, %v217
    %v220 = vmul.f32 %v162, %v218
    %v222 = vlaneseq
    %v223 = vshrl.u32 %v222, 7
    %v224 = vsub.s32 0, %v223
    %v225 = vrot.slane %v220, %v224
    %v226 = vlaneseq
    %v227 = vshrl.u32 %v226, 7
    %v228 = vsub.s32 1, %v227
    %v229 = vrot.slane %v220, %v228
    %v232 = vmul.f32 %v190, %v225
    %v233 = vmul.f32 %v191, %v229
    %v236 = vcombine.low %v232, %v233
    %v238 = vunpack.c.l.s4 1966171168
    %v239 = vunpack.c.0.s8 %v238
    %v240 = vlaneseq
    %v241 = vshrl.u32 %v240, 7
    %v242 = vsub.s32 %v239, %v241
    %v243 = vrot.slane %v236, %v242
    %v245 = vunpack.c.l.s4 1966171168
    %v246 = vunpack.c.0.s8 %v245
    %v247 = vlaneseq
    %v248 = vshrl.u32 %v247, 7
    %v249 = vsub.s32 %v246, %v248
    %v250 = vrot.slane %v243, %v249
    %v252 = vsub.f32 %v163, %v250
    %v253 = vmul.f32 %v158, %v225
    %v254 = vmul.f32 %v160, %v229
    %v256 = vlaneseq
    %v257 = vshrl.u32 %v256, 7
    %v258 = vsub.s32 0, %v257
    %v259 = vrot.slane %v252, %v258
    %v260 = vlaneseq
    %v261 = vshrl.u32 %v260, 7
    %v262 = vsub.s32 1, %v261
    %v263 = vrot.slane %v252, %v262
    %v266 = vadd.f32 %v253, %v259
    %v267 = vadd.f32 %v254, %v263
    %v268 = vmax.f32 %v266, 0.0
    %v269 = vmax.f32 %v267, 0.0
    %v270 = vld [vmem:[#allocation7] sm:$0xff]
    %v271 = vld [vmem:[#allocation7 + $0x8] sm:$0xff]
    %v272 = vld [vmem:[#allocation7 + $0x10] sm:$0xff]
    %v273 = vld [vmem:[#allocation7 + $0x18] sm:$0xff]
    %v274 = vld [vmem:[#allocation7 + $0x20] sm:$0xff]
    %v275 = vld [vmem:[#allocation7 + $0x28] sm:$0xff]
    %v276 = vld [vmem:[#allocation7 + $0x30] sm:$0xff]
    %v277 = vld [vmem:[#allocation7 + $0x38] sm:$0xff]
    %v278 = vld [vmem:[#allocation7 + $0x40] sm:$0xff]
    %v279 = vld [vmem:[#allocation7 + $0x48] sm:$0xff]
    %v280 = vld [vmem:[#allocation7 + $0x50] sm:$0xff]
    %v281 = vld [vmem:[#allocation7 + $0x58] sm:$0xff]
    %v282 = vld [vmem:[#allocation7 + $0x60] sm:$0xff]
    %v283 = vld [vmem:[#allocation7 + $0x68] sm:$0xff]
    %v284 = vld [vmem:[#allocation7 + $0x70] sm:$0xff]
    %v285 = vld [vmem:[#allocation7 + $0x78] sm:$0xff]
    %v286 = vld [vmem:[#allocation7 + $0x80] sm:$0xff]
    %v287 = vld [vmem:[#allocation7 + $0x88] sm:$0xff]
    %v288 = vld [vmem:[#allocation7 + $0x90] sm:$0xff]
    %v289 = vld [vmem:[#allocation7 + $0x98] sm:$0xff]
    %v290 = vld [vmem:[#allocation7 + $0xa0] sm:$0xff]
    %v291 = vld [vmem:[#allocation7 + $0xa8] sm:$0xff]
    %v292 = vld [vmem:[#allocation7 + $0xb0] sm:$0xff]
    %v293 = vld [vmem:[#allocation7 + $0xb8] sm:$0xff]
    %v294 = vld [vmem:[#allocation7 + $0xc0] sm:$0xff]
    %v295 = vld [vmem:[#allocation7 + $0xc8] sm:$0xff]
    %v296 = vld [vmem:[#allocation7 + $0xd0] sm:$0xff]
    %v297 = vld [vmem:[#allocation7 + $0xd8] sm:$0xff]
    %v298 = vld [vmem:[#allocation7 + $0xe0] sm:$0xff]
    %v299 = vld [vmem:[#allocation7 + $0xe8] sm:$0xff]
    %v300 = vld [vmem:[#allocation7 + $0xf0] sm:$0xff]
    %v301 = vld [vmem:[#allocation7 + $0xf8] sm:$0xff]
    %v302 = vld [vmem:[#allocation7 + $0x100] sm:$0xff]
    %v303 = vld [vmem:[#allocation7 + $0x108] sm:$0xff]
    %v304 = vld [vmem:[#allocation7 + $0x110] sm:$0xff]
    %v305 = vld [vmem:[#allocation7 + $0x118] sm:$0xff]
    %v306 = vld [vmem:[#allocation7 + $0x120] sm:$0xff]
    %v307 = vld [vmem:[#allocation7 + $0x128] sm:$0xff]
    %v308 = vld [vmem:[#allocation7 + $0x130] sm:$0xff]
    %v309 = vld [vmem:[#allocation7 + $0x138] sm:$0xff]
    %v310 = vld [vmem:[#allocation7 + $0x140] sm:$0xff]
    %v311 = vld [vmem:[#allocation7 + $0x148] sm:$0xff]
    %v312 = vld [vmem:[#allocation7 + $0x150] sm:$0xff]
    %v313 = vld [vmem:[#allocation7 + $0x158] sm:$0xff]
    %v314 = vld [vmem:[#allocation7 + $0x160] sm:$0xff]
    %v315 = vld [vmem:[#allocation7 + $0x168] sm:$0xff]
    %v316 = vld [vmem:[#allocation7 + $0x170] sm:$0xff]
    %v317 = vld [vmem:[#allocation7 + $0x178] sm:$0xff]
    %v318 = vld [vmem:[#allocation7 + $0x180] sm:$0xff]
    %v319 = vld [vmem:[#allocation7 + $0x188] sm:$0xff]
    %v320 = vld [vmem:[#allocation7 + $0x190] sm:$0xff]
    %v321 = vld [vmem:[#allocation7 + $0x198] sm:$0xff]
    %v322 = vld [vmem:[#allocation7 + $0x1a0] sm:$0xff]
    %v323 = vld [vmem:[#allocation7 + $0x1a8] sm:$0xff]
    %v324 = vld [vmem:[#allocation7 + $0x1b0] sm:$0xff]
    %v325 = vld [vmem:[#allocation7 + $0x1b8] sm:$0xff]
    %v326 = vld [vmem:[#allocation7 + $0x1c0] sm:$0xff]
    %v327 = vld [vmem:[#allocation7 + $0x1c8] sm:$0xff]
    %v328 = vld [vmem:[#allocation7 + $0x1d0] sm:$0xff]
    %v329 = vld [vmem:[#allocation7 + $0x1d8] sm:$0xff]
    %v330 = vld [vmem:[#allocation7 + $0x1e0] sm:$0xff]
    %v331 = vld [vmem:[#allocation7 + $0x1e8] sm:$0xff]
    %v332 = vld [vmem:[#allocation7 + $0x1f0] sm:$0xff]
    %v333 = vld [vmem:[#allocation7 + $0x1f8] sm:$0xff]
    %334 = vmatprep.subr.mxu0 %v271
    %335 = vmatpush1.msra.mxu0 %v270
    %336 = vmatprep.subr.mxu0 %v273
    %337 = vmatpush1.msra.mxu0 %v272
    %338 = vmatprep.subr.mxu0 %v275
    %339 = vmatpush1.msra.mxu0 %v274
    %340 = vmatprep.subr.mxu0 %v277
    %341 = vmatpush1.msra.mxu0 %v276
    %342 = vmatprep.subr.mxu0 %v279
    %343 = vmatpush1.msra.mxu0 %v278
    %344 = vmatprep.subr.mxu0 %v281
    %345 = vmatpush1.msra.mxu0 %v280
    %346 = vmatprep.subr.mxu0 %v283
    %347 = vmatpush1.msra.mxu0 %v282
    %348 = vmatprep.subr.mxu0 %v285
    %349 = vmatpush1.msra.mxu0 %v284
    %350 = vmatprep.subr.mxu0 %v287
    %351 = vmatpush1.msra.mxu0 %v286
    %352 = vmatprep.subr.mxu0 %v289
    %353 = vmatpush1.msra.mxu0 %v288
    %354 = vmatprep.subr.mxu0 %v291
    %355 = vmatpush1.msra.mxu0 %v290
    %356 = vmatprep.subr.mxu0 %v293
    %357 = vmatpush1.msra.mxu0 %v292
    %358 = vmatprep.subr.mxu0 %v295
    %359 = vmatpush1.msra.mxu0 %v294
    %360 = vmatprep.subr.mxu0 %v297
    %361 = vmatpush1.msra.mxu0 %v296
    %362 = vmatprep.subr.mxu0 %v299
    %363 = vmatpush1.msra.mxu0 %v298
    %364 = vmatprep.subr.mxu0 %v301
    %365 = vmatpush1.msra.mxu0 %v300
    %366 = vmatprep.subr.mxu0 %v303
    %367 = vmatpush1.msra.mxu0 %v302
    %368 = vmatprep.subr.mxu0 %v305
    %369 = vmatpush1.msra.mxu0 %v304
    %370 = vmatprep.subr.mxu0 %v307
    %371 = vmatpush1.msra.mxu0 %v306
    %372 = vmatprep.subr.mxu0 %v309
    %373 = vmatpush1.msra.mxu0 %v308
    %374 = vmatprep.subr.mxu0 %v311
    %375 = vmatpush1.msra.mxu0 %v310
    %376 = vmatprep.subr.mxu0 %v313
    %377 = vmatpush1.msra.mxu0 %v312
    %378 = vmatprep.subr.mxu0 %v315
    %379 = vmatpush1.msra.mxu0 %v314
    %380 = vmatprep.subr.mxu0 %v317
    %381 = vmatpush1.msra.mxu0 %v316
    %382 = vmatprep.subr.mxu0 %v319
    %383 = vmatpush1.msra.mxu0 %v318
    %384 = vmatprep.subr.mxu0 %v321
    %385 = vmatpush1.msra.mxu0 %v320
    %386 = vmatprep.subr.mxu0 %v323
    %387 = vmatpush1.msra.mxu0 %v322
    %388 = vmatprep.subr.mxu0 %v325
    %389 = vmatpush1.msra.mxu0 %v324
    %390 = vmatprep.subr.mxu0 %v327
    %391 = vmatpush1.msra.mxu0 %v326
    %392 = vmatprep.subr.mxu0 %v329
    %393 = vmatpush1.msra.mxu0 %v328
    %394 = vmatprep.subr.mxu0 %v331
    %395 = vmatpush1.msra.mxu0 %v330
    %396 = vmatprep.subr.mxu0 %v333
    %397 = vmatpush1.msra.mxu0 %v332
    %398 = vmatprep.mubr.f32.mxu0 %v269
    %399 = vmatmul.mubr.f32.gmra.mrb[0].mxu0 %v268
    %v400 = vpop.f32.mrb[0].mxu0
    %v401 = vadd.f32 0.0, %v400
    %v402 = vpop.f32.mrb[0].mxu0
    %v403 = vadd.f32 0.0, %v402
    %404 = vdwg.mxu0
    %v405 = vld [vmem:[%s5] sm:$0x3]
    %v406 = vld [vmem:[%s6] sm:$0x3]
    %v407 = vrot.slane %v401, 4
    %v408 = vadd.f32 %v401, %v407
    %v409 = vrot.slane %v408, 2
    %v410 = vadd.f32 %v408, %v409
    %v411 = vrot.slane %v410, 1
    %v412 = vadd.f32 %v410, %v411
    %v413 = vrot.slane %v403, 4
    %v414 = vadd.f32 %v403, %v413
    %v415 = vrot.slane %v414, 2
    %v416 = vadd.f32 %v414, %v415
    %v417 = vrot.slane %v416, 1
    %v418 = vadd.f32 %v416, %v417
    %v419 = vmul.f32 %v401, %v401
    %v420 = vmul.f32 %v403, %v403
    %v421 = vrot.slane %v419, 4
    %v422 = vadd.f32 %v419, %v421
    %v423 = vrot.slane %v422, 2
    %v424 = vadd.f32 %v422, %v423
    %v425 = vrot.slane %v424, 1
    %v426 = vadd.f32 %v424, %v425
    %v427 = vrot.slane %v420, 4
    %v428 = vadd.f32 %v420, %v427
    %v429 = vrot.slane %v428, 2
    %v430 = vadd.f32 %v428, %v429
    %v431 = vrot.slane %v430, 1
    %v432 = vadd.f32 %v430, %v431
    %v433 = vmul.f32 %v412, 0.125
    %v434 = vmul.f32 %v418, 0.125
    %v435 = vmul.f32 %v426, 0.125
    %v436 = vmul.f32 %v432, 0.125
    %v437 = vmul.f32 %v433, %v433
    %v438 = vmul.f32 %v434, %v434
    %v439 = vsub.f32 %v435, %v437
    %v440 = vsub.f32 %v436, %v438
    %v441 = vadd.f32 %v439, 1e-05
    %v442 = vadd.f32 %v440, 1e-05
    %v443 = vrsqrt.pop %v441
    %v444 = vrsqrt.pop %v442
    %v447 = vcombine.low %v443, %v444
    %v449 = vunpack.c.l.s4 1966171168
    %v450 = vunpack.c.0.s8 %v449
    %v451 = vlaneseq
    %v452 = vshrl.u32 %v451, 7
    %v453 = vsub.s32 %v450, %v452
    %v454 = vrot.slane %v447, %v453
    %v456 = vunpack.c.l.s4 1966171168
    %v457 = vunpack.c.0.s8 %v456
    %v458 = vlaneseq
    %v459 = vshrl.u32 %v458, 7
    %v460 = vsub.s32 %v457, %v459
    %v461 = vrot.slane %v454, %v460
    %v463 = vmul.f32 %v405, %v461
    %v465 = vlaneseq
    %v466 = vshrl.u32 %v465, 7
    %v467 = vsub.s32 0, %v466
    %v468 = vrot.slane %v463, %v467
    %v469 = vlaneseq
    %v470 = vshrl.u32 %v469, 7
    %v471 = vsub.s32 1, %v470
    %v472 = vrot.slane %v463, %v471
    %v475 = vmul.f32 %v433, %v468
    %v476 = vmul.f32 %v434, %v472
    %v479 = vcombine.low %v475, %v476
    %v481 = vunpack.c.l.s4 1966171168
    %v482 = vunpack.c.0.s8 %v481
    %v483 = vlaneseq
    %v484 = vshrl.u32 %v483, 7
    %v485 = vsub.s32 %v482, %v484
    %v486 = vrot.slane %v479, %v485
    %v488 = vunpack.c.l.s4 1966171168
    %v489 = vunpack.c.0.s8 %v488
    %v490 = vlaneseq
    %v491 = vshrl.u32 %v490, 7
    %v492 = vsub.s32 %v489, %v491
    %v493 = vrot.slane %v486, %v492
    %v495 = vsub.f32 %v406, %v493
    %v496 = vmul.f32 %v401, %v468
    %v497 = vmul.f32 %v403, %v472
    %v499 = vlaneseq
    %v500 = vshrl.u32 %v499, 7
    %v501 = vsub.s32 0, %v500
    %v502 = vrot.slane %v495, %v501
    %v503 = vlaneseq
    %v504 = vshrl.u32 %v503, 7
    %v505 = vsub.s32 1, %v504
    %v506 = vrot.slane %v495, %v505
    %v509 = vadd.f32 %v496, %v502
    %v510 = vadd.f32 %v497, %v506
    %v511 = vmax.f32 %v509, 0.0
    %v512 = vmax.f32 %v510, 0.0
    %v513 = vld [vmem:[#allocation8] sm:$0xff]
    %v514 = vld [vmem:[#allocation8 + $0x8] sm:$0xff]
    %v515 = vld [vmem:[#allocation8 + $0x10] sm:$0xff]
    %v516 = vld [vmem:[#allocation8 + $0x18] sm:$0xff]
    %v517 = vld [vmem:[#allocation8 + $0x20] sm:$0xff]
    %v518 = vld [vmem:[#allocation8 + $0x28] sm:$0xff]
    %v519 = vld [vmem:[#allocation8 + $0x30] sm:$0xff]
    %v520 = vld [vmem:[#allocation8 + $0x38] sm:$0xff]
    %v521 = vld [vmem:[#allocation8 + $0x40] sm:$0xff]
    %v522 = vld [vmem:[#allocation8 + $0x48] sm:$0xff]
    %v523 = vld [vmem:[#allocation8 + $0x50] sm:$0xff]
    %v524 = vld [vmem:[#allocation8 + $0x58] sm:$0xff]
    %v525 = vld [vmem:[#allocation8 + $0x60] sm:$0xff]
    %v526 = vld [vmem:[#allocation8 + $0x68] sm:$0xff]
    %v527 = vld [vmem:[#allocation8 + $0x70] sm:$0xff]
    %v528 = vld [vmem:[#allocation8 + $0x78] sm:$0xff]
    %v529 = vld [vmem:[#allocation8 + $0x80] sm:$0xff]
    %v530 = vld [vmem:[#allocation8 + $0x88] sm:$0xff]
    %v531 = vld [vmem:[#allocation8 + $0x90] sm:$0xff]
    %v532 = vld [vmem:[#allocation8 + $0x98] sm:$0xff]
    %v533 = vld [vmem:[#allocation8 + $0xa0] sm:$0xff]
    %v534 = vld [vmem:[#allocation8 + $0xa8] sm:$0xff]
    %v535 = vld [vmem:[#allocation8 + $0xb0] sm:$0xff]
    %v536 = vld [vmem:[#allocation8 + $0xb8] sm:$0xff]
    %v537 = vld [vmem:[#allocation8 + $0xc0] sm:$0xff]
    %v538 = vld [vmem:[#allocation8 + $0xc8] sm:$0xff]
    %v539 = vld [vmem:[#allocation8 + $0xd0] sm:$0xff]
    %v540 = vld [vmem:[#allocation8 + $0xd8] sm:$0xff]
    %v541 = vld [vmem:[#allocation8 + $0xe0] sm:$0xff]
    %v542 = vld [vmem:[#allocation8 + $0xe8] sm:$0xff]
    %v543 = vld [vmem:[#allocation8 + $0xf0] sm:$0xff]
    %v544 = vld [vmem:[#allocation8 + $0xf8] sm:$0xff]
    %v545 = vld [vmem:[%s8] sm:$0x1]
    %v547 = vlaneseq
    %v548 = vshrl.u32 %v547, 7
    %v549 = vsub.s32 0, %v548
    %v550 = vrot.slane %v545, %v549
    %552 = vmatprep.subr.mxu0 0.0
    %553 = vmatpush1.msra.mxu0 %v513
    %554 = vmatprep.subr.mxu0 0.0
    %555 = vmatpush1.msra.mxu0 %v514
    %556 = vmatprep.subr.mxu0 0.0
    %557 = vmatpush1.msra.mxu0 %v515
    %558 = vmatprep.subr.mxu0 0.0
    %559 = vmatpush1.msra.mxu0 %v516
    %560 = vmatprep.subr.mxu0 0.0
    %561 = vmatpush1.msra.mxu0 %v517
    %562 = vmatprep.subr.mxu0 0.0
    %563 = vmatpush1.msra.mxu0 %v518
    %564 = vmatprep.subr.mxu0 0.0
    %565 = vmatpush1.msra.mxu0 %v519
    %566 = vmatprep.subr.mxu0 0.0
    %567 = vmatpush1.msra.mxu0 %v520
    %568 = vmatprep.subr.mxu0 0.0
    %569 = vmatpush1.msra.mxu0 %v521
    %570 = vmatprep.subr.mxu0 0.0
    %571 = vmatpush1.msra.mxu0 %v522
    %572 = vmatprep.subr.mxu0 0.0
    %573 = vmatpush1.msra.mxu0 %v523
    %574 = vmatprep.subr.mxu0 0.0
    %575 = vmatpush1.msra.mxu0 %v524
    %576 = vmatprep.subr.mxu0 0.0
    %577 = vmatpush1.msra.mxu0 %v525
    %578 = vmatprep.subr.mxu0 0.0
    %579 = vmatpush1.msra.mxu0 %v526
    %580 = vmatprep.subr.mxu0 0.0
    %581 = vmatpush1.msra.mxu0 %v527
    %582 = vmatprep.subr.mxu0 0.0
    %583 = vmatpush1.msra.mxu0 %v528
    %584 = vmatprep.subr.mxu0 0.0
    %585 = vmatpush1.msra.mxu0 %v529
    %586 = vmatprep.subr.mxu0 0.0
    %587 = vmatpush1.msra.mxu0 %v530
    %588 = vmatprep.subr.mxu0 0.0
    %589 = vmatpush1.msra.mxu0 %v531
    %590 = vmatprep.subr.mxu0 0.0
    %591 = vmatpush1.msra.mxu0 %v532
    %592 = vmatprep.subr.mxu0 0.0
    %593 = vmatpush1.msra.mxu0 %v533
    %594 = vmatprep.subr.mxu0 0.0
    %595 = vmatpush1.msra.mxu0 %v534
    %596 = vmatprep.subr.mxu0 0.0
    %597 = vmatpush1.msra.mxu0 %v535
    %598 = vmatprep.subr.mxu0 0.0
    %599 = vmatpush1.msra.mxu0 %v536
    %600 = vmatprep.subr.mxu0 0.0
    %601 = vmatpush1.msra.mxu0 %v537
    %602 = vmatprep.subr.mxu0 0.0
    %603 = vmatpush1.msra.mxu0 %v538
    %604 = vmatprep.subr.mxu0 0.0
    %605 = vmatpush1.msra.mxu0 %v539
    %606 = vmatprep.subr.mxu0 0.0
    %607 = vmatpush1.msra.mxu0 %v540
    %608 = vmatprep.subr.mxu0 0.0
    %609 = vmatpush1.msra.mxu0 %v541
    %610 = vmatprep.subr.mxu0 0.0
    %611 = vmatpush1.msra.mxu0 %v542
    %612 = vmatprep.subr.mxu0 0.0
    %613 = vmatpush1.msra.mxu0 %v543
    %614 = vmatprep.subr.mxu0 0.0
    %615 = vmatpush1.msra.mxu0 %v544
    %616 = vmatprep.mubr.f32.mxu0 %v512
    %617 = vmatmul.mubr.f32.gmra.mrb[0].mxu0 %v511
    %v618 = vpop.f32.mrb[0].mxu0
    %v619 = vadd.f32 %v550, %v618
    %v620 = vpop.f32.mrb[0].mxu0
    %621 = vdwg.mxu0
    %622 = vst [vmem:[#allocation10] sm:$0xff] %v619
    // Predicated region
    $region54: #{tpu_custom_call.1} parent=1 // pred_check
      _
    $region55: #{tpu_custom_call.1} parent=1 // pred_check_branch
      %624 = sbr.rel (0) target = $region57
    $region56: #{tpu_custom_call.1} parent=1 // pred_region
      %s626 = ssub.s32 128, 128
      %627 = vsyncadd [#allocation4], %s626
      %s629 = sshll.u32 [#allocation10], 4
      %s630 = int_to_ptr.vmem [resolvable:$true] %s629
      %632 = dma.vmem_to_hbm [thread:$0]  %s630, 128, %s9, [#allocation4]
    $region57: #{tpu_custom_call.1} parent=1 // pred_fallthru
      _
    // Predicated region
    $region58: #{tpu_custom_call.1} parent=1 // pred_check
      _
    $region59: #{tpu_custom_call.1} parent=1 // pred_check_branch
      %634 = sbr.rel (0) target = $region61
    $region60: #{tpu_custom_call.1} parent=1 // pred_region
      %635 = dma.done [#allocation4], 128
    $region61: #{tpu_custom_call.1} parent=1 // pred_fallthru
      _
    %636 = vsyncpa [#allocation3], 1
    %637 = vsyncpa [#allocation6], 1
    %638 = vsyncpa [#allocation9], 1
    %639 = vsyncpa [#allocation4], 1

</llo_original>
